<compile_context>
chip_gen: v5e
topology: v5e:2x2
jax: 0.10.0
libtpu: 0.0.40
codegen_flags: <defaults>
</compile_context>

<pallas_src>
import jax
import jax.numpy as jnp
import numpy as np
from jax.experimental import pallas as pl
from jax.experimental.pallas import tpu as pltpu


def ssregion_kernel(o_ref, d_ref, oreg_ref, dreg_ref, regflat_ref,
                    node_tab_ref, reg_tab_ref,
                    w1o_ref, w1or_ref, w1d_ref, w1dr_ref, b1_ref,
                    w2q_ref, c2_ref, wrm_ref, out_ref):
    f32 = jnp.float32
    node_tab = node_tab_ref[...]                 # (node_num, d_node)
    reg_tab = reg_tab_ref[...]                   # (region_num, d_r)
    node_num = node_tab.shape[0]
    region_num = reg_tab.shape[0]
    d_r = reg_tab.shape[1]
    B, R = out_ref.shape

    def one_hot(idx_col, vocab):
        # idx_col: (N, 1) int32 -> (N, vocab) f32 one-hot (VPU compare against an iota).
        iota = jax.lax.broadcasted_iota(jnp.int32, (idx_col.shape[0], vocab), 1)
        return (idx_col == iota).astype(f32)

    # ---- embedding gathers fused in-kernel as one-hot @ table (MXU) ----
    o_emb = jnp.dot(one_hot(o_ref[...], node_num), node_tab, preferred_element_type=f32)
    d_emb = jnp.dot(one_hot(d_ref[...], node_num), node_tab, preferred_element_type=f32)
    or_emb = jnp.dot(one_hot(oreg_ref[...], region_num), reg_tab, preferred_element_type=f32)
    dr_emb = jnp.dot(one_hot(dreg_ref[...], region_num), reg_tab, preferred_element_type=f32)

    # ---- Linear1 with BatchNorm(eval) pre-folded into w1/b1; concat never formed:
    #      cat(o, or, d, dr) @ W1 == o@W1[:dn] + or@W1[dn:dn+dr] + d@W1[..] + dr@W1[..]
    h = (jnp.dot(o_emb, w1o_ref[...], preferred_element_type=f32)
         + jnp.dot(or_emb, w1or_ref[...], preferred_element_type=f32)
         + jnp.dot(d_emb, w1d_ref[...], preferred_element_type=f32)
         + jnp.dot(dr_emb, w1dr_ref[...], preferred_element_type=f32)
         + b1_ref[...])
    h = jnp.maximum(h, 0.0)
    # TODO(synk): Dropout and train-mode BatchNorm batch statistics omitted (eval semantics:
    #             Dropout is identity, BN uses running stats) — matches the reference forward.

    # ---- query branch: Linear2 -> fc_layer2(query half) -> mean(d_node), folded to a matvec:
    #      mean_n((h@w2 + b2) @ wq[:, n]) == h @ (w2 @ mean_n(wq)) + b2 @ mean_n(wq)
    qscal = jnp.dot(h, w2q_ref[...], preferred_element_type=f32) + c2_ref[...]    # (B, 1)

    # ---- region branch: gather region embeddings (one-hot @ table), then fold
    #      fc_layer2's region half + the mean over d_node into a weighted lane-sum over d_r.
    oh_reg = one_hot(regflat_ref[...], region_num)                                 # (B*R, region_num)
    regemb = jnp.dot(oh_reg, reg_tab, preferred_element_type=f32)                  # (B*R, d_r)
    reg3 = regemb.reshape(B, R, d_r)                                               # split leading dims
    rscal = jnp.sum(reg3 * wrm_ref[...], axis=-1)                                  # (B, R)

    out_ref[...] = jax.nn.sigmoid(qscal + rscal).astype(out_ref.dtype)


def ssregion_pred(params, o, d, o_reg, d_reg, regions, weights=None):
    """SSRegionPred.forward(train_phase=True) as a single fused pallas_call.

    `weights` is accepted for API parity with the PyTorch forward but is unused.
    """
    node_emb = params["node_emb"]                    # (node_num, d_node)
    region_tab = params["region_emb"]                # (region_num, d_r)
    d_node = node_emb.shape[1]
    d_r = region_tab.shape[1]
    B = o.shape[0]
    R = regions.shape[1]

    # ---- weight-only algebraic folds (parameter preprocessing) ----
    inv_std = 1.0 / np.sqrt(1.0 + 1e-6)              # BN eval: running_mean=0, running_var=1
    scale = params["gamma"] * inv_std                # (1, d_m2)
    w1f = params["w1"] * scale                       # BN scale folded into Linear1 weight
    b1f = params["b1"] * scale + params["beta"]      # BN shift folded into Linear1 bias
    # Split Linear1 rows to match the concat order [o_emb, o_reg_emb, d_emb, d_reg_emb].
    w1o = w1f[:d_node]
    w1or = w1f[d_node:d_node + d_r]
    w1d = w1f[d_node + d_r:2 * d_node + d_r]
    w1dr = w1f[2 * d_node + d_r:]
    # Fold the mean over d_node of fc_layer2 into the weights.
    wq_mean = jnp.mean(params["wq"], axis=1, keepdims=True)       # (d_m3, 1)
    wr_mean = jnp.mean(params["wr"], axis=1).reshape(1, 1, d_r)   # (1, 1, d_r)
    w2q = params["w2"] @ wq_mean                                   # (d_m2, 1)
    c2 = params["b2"] @ wq_mean                                    # (1, 1)

    # Indices as small 2-D int32 operands, gathered in-kernel via one-hot matmuls.
    o_i = o.reshape(B, 1).astype(jnp.int32)
    d_i = d.reshape(B, 1).astype(jnp.int32)
    oreg_i = o_reg.reshape(B, 1).astype(jnp.int32)
    dreg_i = d_reg.reshape(B, 1).astype(jnp.int32)
    regions_flat = regions.reshape(B * R, 1).astype(jnp.int32)

    in_arrays = (o_i, d_i, oreg_i, dreg_i, regions_flat,
                 node_emb, region_tab,
                 w1o, w1or, w1d, w1dr, b1f,
                 w2q, c2, wr_mean)

    def full_spec(shape):
        return pl.BlockSpec(shape, lambda i, _n=len(shape): (0,) * _n)

    return pl.pallas_call(
        ssregion_kernel,
        out_shape=jax.ShapeDtypeStruct((B, R), jnp.float32),
        grid=(1,),
        in_specs=[full_spec(a.shape) for a in in_arrays],
        out_specs=pl.BlockSpec((B, R), lambda i: (0, 0)),
        compiler_params=pltpu.CompilerParams(dimension_semantics=("arbitrary",)),
    )(*in_arrays)


def ssregion_pred_reference(params, o, d, o_reg, d_reg, regions):
    """Pure-JAX reference matching the PyTorch forward (eval BN/Dropout)."""
    node_emb = params["node_emb"]
    region_tab = params["region_emb"]
    o_emb, d_emb = node_emb[o], node_emb[d]
    o_reg_emb, d_reg_emb = region_tab[o_reg], region_tab[d_reg]
    x = jnp.concatenate([o_emb, o_reg_emb, d_emb, d_reg_emb], axis=1)
    h = x @ params["w1"] + params["b1"]
    h = h / jnp.sqrt(1.0 + 1e-6) * params["gamma"] + params["beta"]
    h = jnp.maximum(h, 0.0)
    q = h @ params["w2"] + params["b2"]                                  # (B, d_m3)
    regemb = region_tab[regions]                                         # (B, R, d_r)
    B, R, _ = regemb.shape
    q_exp = jnp.broadcast_to(q[:, None, :], (B, R, q.shape[1]))
    inputs = jnp.concatenate([q_exp, regemb], axis=-1)                   # (B, R, d_m4)
    wfc = jnp.concatenate([params["wq"], params["wr"]], axis=0)          # (d_m4, d_node)
    out = jnp.einsum("brm,mn->brn", inputs, wfc)
    out = jnp.mean(out, axis=-1)
    return jax.nn.sigmoid(out)


if __name__ == "__main__":
    # Small hparams consistent with the module's shape constraints:
    #   d_m1 = 2 * (d_node + d_r),  d_m4 = d_m3 + d_r
    B = 8            # batch_size
    node_num = 64
    d_node = 32
    d_r = 16         # pretrained region embedding dim
    region_num = 16  # also region vocab size
    d_m1 = 2 * (d_node + d_r)   # 96
    d_m2 = 64
    d_m3 = 32
    d_m4 = d_m3 + d_r           # 48

    key = jax.random.PRNGKey(0)
    ks = jax.random.split(key, 16)

    params = {
        "node_emb":   jax.random.normal(ks[0], (node_num, d_node), jnp.float32) * 0.1,
        "region_emb": jax.random.normal(ks[1], (region_num, d_r), jnp.float32) * 0.1,
        "w1":    jax.random.normal(ks[2], (d_m1, d_m2), jnp.float32) / np.sqrt(d_m1),
        "b1":    jax.random.normal(ks[3], (1, d_m2), jnp.float32) * 0.01,
        "gamma": 1.0 + 0.1 * jax.random.normal(ks[4], (1, d_m2), jnp.float32),
        "beta":  0.01 * jax.random.normal(ks[5], (1, d_m2), jnp.float32),
        "w2":    jax.random.normal(ks[6], (d_m2, d_m3), jnp.float32) / np.sqrt(d_m2),
        "b2":    jax.random.normal(ks[7], (1, d_m3), jnp.float32) * 0.01,
    }
    # fc_layer2: Linear(d_m4, d_node, bias=False); stored transposed and split.
    wfc_t = jax.random.normal(ks[8], (d_m4, d_node), jnp.float32) / np.sqrt(d_m4)
    params["wq"] = wfc_t[:d_m3]   # (d_m3, d_node) — multiplies the query part
    params["wr"] = wfc_t[d_m3:]   # (d_r, d_node)  — multiplies the region part

    o = jax.random.randint(ks[9], (B,), 0, node_num, dtype=jnp.int32)
    d = jax.random.randint(ks[10], (B,), 0, node_num, dtype=jnp.int32)
    o_reg = jax.random.randint(ks[11], (B,), 0, region_num, dtype=jnp.int32)
    d_reg = jax.random.randint(ks[12], (B,), 0, region_num, dtype=jnp.int32)
    regions = jax.random.randint(ks[13], (B, region_num), 0, region_num, dtype=jnp.int32)
    weights = jax.random.normal(ks[14], (B, region_num), jnp.float32)   # unused by forward

    out = ssregion_pred(params, o, d, o_reg, d_reg, regions, weights)
    out = jax.block_until_ready(out)

    ref = ssregion_pred_reference(params, o, d, o_reg, d_reg, regions)
    np.testing.assert_allclose(np.asarray(out), np.asarray(ref), rtol=1e-5, atol=1e-5)
    assert out.shape == (B, region_num)
    print("KERNEL_OK")
</pallas_src>

<mosaic_0001>
module attributes {stable_mosaic.version = 11 : i64} {
  func.func @ssregion_kernel(%arg0: i32, %arg1: memref<8x1xi32, #tpu.memory_space<vmem>>, %arg2: memref<8x1xi32, #tpu.memory_space<vmem>>, %arg3: memref<8x1xi32, #tpu.memory_space<vmem>>, %arg4: memref<8x1xi32, #tpu.memory_space<vmem>>, %arg5: memref<128x1xi32, #tpu.memory_space<vmem>>, %arg6: memref<64x32xf32, #tpu.memory_space<vmem>>, %arg7: memref<16x16xf32, #tpu.memory_space<vmem>>, %arg8: memref<32x64xf32, #tpu.memory_space<vmem>>, %arg9: memref<16x64xf32, #tpu.memory_space<vmem>>, %arg10: memref<32x64xf32, #tpu.memory_space<vmem>>, %arg11: memref<16x64xf32, #tpu.memory_space<vmem>>, %arg12: memref<1x64xf32, #tpu.memory_space<vmem>>, %arg13: memref<64x1xf32, #tpu.memory_space<vmem>>, %arg14: memref<1x1xf32, #tpu.memory_space<vmem>>, %arg15: memref<1x1x16xf32, #tpu.memory_space<vmem>>, %arg16: memref<8x16xf32, #tpu.memory_space<vmem>>) attributes {dimension_semantics = [#tpu.dimension_semantics<arbitrary>], iteration_bounds = array<i64: 1>, scalar_prefetch = 0 : i64, scratch_operands = 0 : i64, tpu.core_type = #tpu.core_type<tc>, window_params = [{pipeline_mode = #tpu.pipeline_mode<synchronous>, transform_indices = @transform_0, window_bounds = array<i64: 8, 1>}, {pipeline_mode = #tpu.pipeline_mode<synchronous>, transform_indices = @transform_1, window_bounds = array<i64: 8, 1>}, {pipeline_mode = #tpu.pipeline_mode<synchronous>, transform_indices = @transform_2, window_bounds = array<i64: 8, 1>}, {pipeline_mode = #tpu.pipeline_mode<synchronous>, transform_indices = @transform_3, window_bounds = array<i64: 8, 1>}, {pipeline_mode = #tpu.pipeline_mode<synchronous>, transform_indices = @transform_4, window_bounds = array<i64: 128, 1>}, {pipeline_mode = #tpu.pipeline_mode<synchronous>, transform_indices = @transform_5, window_bounds = array<i64: 64, 32>}, {pipeline_mode = #tpu.pipeline_mode<synchronous>, transform_indices = @transform_6, window_bounds = array<i64: 16, 16>}, {pipeline_mode = #tpu.pipeline_mode<synchronous>, transform_indices = @transform_7, window_bounds = array<i64: 32, 64>}, {pipeline_mode = #tpu.pipeline_mode<synchronous>, transform_indices = @transform_8, window_bounds = array<i64: 16, 64>}, {pipeline_mode = #tpu.pipeline_mode<synchronous>, transform_indices = @transform_9, window_bounds = array<i64: 32, 64>}, {pipeline_mode = #tpu.pipeline_mode<synchronous>, transform_indices = @transform_10, window_bounds = array<i64: 16, 64>}, {pipeline_mode = #tpu.pipeline_mode<synchronous>, transform_indices = @transform_11, window_bounds = array<i64: 1, 64>}, {pipeline_mode = #tpu.pipeline_mode<synchronous>, transform_indices = @transform_12, window_bounds = array<i64: 64, 1>}, {pipeline_mode = #tpu.pipeline_mode<synchronous>, transform_indices = @transform_13, window_bounds = array<i64: 1, 1>}, {pipeline_mode = #tpu.pipeline_mode<synchronous>, transform_indices = @transform_14, window_bounds = array<i64: 1, 1, 16>}, {pipeline_mode = #tpu.pipeline_mode<synchronous>, transform_indices = @transform_15, window_bounds = array<i64: 8, 16>}]} {
    %c0 = arith.constant 0 : index
    %c0_0 = arith.constant 0 : index
    %0 = vector.load %arg6[%c0, %c0_0] : memref<64x32xf32, #tpu.memory_space<vmem>>, vector<64x32xf32>
    %c0_1 = arith.constant 0 : index
    %c0_2 = arith.constant 0 : index
    %1 = vector.load %arg7[%c0_1, %c0_2] : memref<16x16xf32, #tpu.memory_space<vmem>>, vector<16x16xf32>
    %c0_3 = arith.constant 0 : index
    %c0_4 = arith.constant 0 : index
    %2 = vector.load %arg1[%c0_3, %c0_4] : memref<8x1xi32, #tpu.memory_space<vmem>>, vector<8x1xi32>
    %3 = tpu.iota {dimensions = array<i32: 1>} : vector<8x64xi32>
    %4 = vector.broadcast %2 : vector<8x1xi32> to vector<8x64xi32>
    %5 = arith.cmpi eq, %4, %3 : vector<8x64xi32>
    %6 = arith.extui %5 : vector<8x64xi1> to vector<8x64xi32>
    %7 = arith.sitofp %6 : vector<8x64xi32> to vector<8x64xf32>
    %cst = arith.constant dense<0.000000e+00> : vector<8x32xf32>
    %8 = tpu.matmul %7, %0, %cst {dimension_numbers = #tpu.dot_dimension_numbers<[1], [0], [0], [1], [0, 0, 1, 1], [], []>} : vector<8x64xf32>, vector<64x32xf32>, vector<8x32xf32> -> vector<8x32xf32>
    %c0_5 = arith.constant 0 : index
    %c0_6 = arith.constant 0 : index
    %9 = vector.load %arg2[%c0_5, %c0_6] : memref<8x1xi32, #tpu.memory_space<vmem>>, vector<8x1xi32>
    %10 = tpu.iota {dimensions = array<i32: 1>} : vector<8x64xi32>
    %11 = vector.broadcast %9 : vector<8x1xi32> to vector<8x64xi32>
    %12 = arith.cmpi eq, %11, %10 : vector<8x64xi32>
    %13 = arith.extui %12 : vector<8x64xi1> to vector<8x64xi32>
    %14 = arith.sitofp %13 : vector<8x64xi32> to vector<8x64xf32>
    %cst_7 = arith.constant dense<0.000000e+00> : vector<8x32xf32>
    %15 = tpu.matmul %14, %0, %cst_7 {dimension_numbers = #tpu.dot_dimension_numbers<[1], [0], [0], [1], [0, 0, 1, 1], [], []>} : vector<8x64xf32>, vector<64x32xf32>, vector<8x32xf32> -> vector<8x32xf32>
    %c0_8 = arith.constant 0 : index
    %c0_9 = arith.constant 0 : index
    %16 = vector.load %arg3[%c0_8, %c0_9] : memref<8x1xi32, #tpu.memory_space<vmem>>, vector<8x1xi32>
    %17 = tpu.iota {dimensions = array<i32: 1>} : vector<8x16xi32>
    %18 = vector.broadcast %16 : vector<8x1xi32> to vector<8x16xi32>
    %19 = arith.cmpi eq, %18, %17 : vector<8x16xi32>
    %20 = arith.extui %19 : vector<8x16xi1> to vector<8x16xi32>
    %21 = arith.sitofp %20 : vector<8x16xi32> to vector<8x16xf32>
    %cst_10 = arith.constant dense<0.000000e+00> : vector<8x16xf32>
    %22 = tpu.matmul %21, %1, %cst_10 {dimension_numbers = #tpu.dot_dimension_numbers<[1], [0], [0], [1], [0, 0, 1, 1], [], []>} : vector<8x16xf32>, vector<16x16xf32>, vector<8x16xf32> -> vector<8x16xf32>
    %c0_11 = arith.constant 0 : index
    %c0_12 = arith.constant 0 : index
    %23 = vector.load %arg4[%c0_11, %c0_12] : memref<8x1xi32, #tpu.memory_space<vmem>>, vector<8x1xi32>
    %24 = tpu.iota {dimensions = array<i32: 1>} : vector<8x16xi32>
    %25 = vector.broadcast %23 : vector<8x1xi32> to vector<8x16xi32>
    %26 = arith.cmpi eq, %25, %24 : vector<8x16xi32>
    %27 = arith.extui %26 : vector<8x16xi1> to vector<8x16xi32>
    %28 = arith.sitofp %27 : vector<8x16xi32> to vector<8x16xf32>
    %cst_13 = arith.constant dense<0.000000e+00> : vector<8x16xf32>
    %29 = tpu.matmul %28, %1, %cst_13 {dimension_numbers = #tpu.dot_dimension_numbers<[1], [0], [0], [1], [0, 0, 1, 1], [], []>} : vector<8x16xf32>, vector<16x16xf32>, vector<8x16xf32> -> vector<8x16xf32>
    %c0_14 = arith.constant 0 : index
    %c0_15 = arith.constant 0 : index
    %30 = vector.load %arg8[%c0_14, %c0_15] : memref<32x64xf32, #tpu.memory_space<vmem>>, vector<32x64xf32>
    %cst_16 = arith.constant dense<0.000000e+00> : vector<8x64xf32>
    %31 = tpu.matmul %8, %30, %cst_16 {dimension_numbers = #tpu.dot_dimension_numbers<[1], [0], [0], [1], [0, 0, 1, 1], [], []>} : vector<8x32xf32>, vector<32x64xf32>, vector<8x64xf32> -> vector<8x64xf32>
    %c0_17 = arith.constant 0 : index
    %c0_18 = arith.constant 0 : index
    %32 = vector.load %arg9[%c0_17, %c0_18] : memref<16x64xf32, #tpu.memory_space<vmem>>, vector<16x64xf32>
    %cst_19 = arith.constant dense<0.000000e+00> : vector<8x64xf32>
    %33 = tpu.matmul %22, %32, %cst_19 {dimension_numbers = #tpu.dot_dimension_numbers<[1], [0], [0], [1], [0, 0, 1, 1], [], []>} : vector<8x16xf32>, vector<16x64xf32>, vector<8x64xf32> -> vector<8x64xf32>
    %34 = arith.addf %31, %33 : vector<8x64xf32>
    %c0_20 = arith.constant 0 : index
    %c0_21 = arith.constant 0 : index
    %35 = vector.load %arg10[%c0_20, %c0_21] : memref<32x64xf32, #tpu.memory_space<vmem>>, vector<32x64xf32>
    %cst_22 = arith.constant dense<0.000000e+00> : vector<8x64xf32>
    %36 = tpu.matmul %15, %35, %cst_22 {dimension_numbers = #tpu.dot_dimension_numbers<[1], [0], [0], [1], [0, 0, 1, 1], [], []>} : vector<8x32xf32>, vector<32x64xf32>, vector<8x64xf32> -> vector<8x64xf32>
    %37 = arith.addf %34, %36 : vector<8x64xf32>
    %c0_23 = arith.constant 0 : index
    %c0_24 = arith.constant 0 : index
    %38 = vector.load %arg11[%c0_23, %c0_24] : memref<16x64xf32, #tpu.memory_space<vmem>>, vector<16x64xf32>
    %cst_25 = arith.constant dense<0.000000e+00> : vector<8x64xf32>
    %39 = tpu.matmul %29, %38, %cst_25 {dimension_numbers = #tpu.dot_dimension_numbers<[1], [0], [0], [1], [0, 0, 1, 1], [], []>} : vector<8x16xf32>, vector<16x64xf32>, vector<8x64xf32> -> vector<8x64xf32>
    %40 = arith.addf %37, %39 : vector<8x64xf32>
    %c0_26 = arith.constant 0 : index
    %c0_27 = arith.constant 0 : index
    %41 = vector.load %arg12[%c0_26, %c0_27] : memref<1x64xf32, #tpu.memory_space<vmem>>, vector<1x64xf32>
    %42 = vector.broadcast %41 : vector<1x64xf32> to vector<8x64xf32>
    %43 = arith.addf %40, %42 : vector<8x64xf32>
    %cst_28 = arith.constant 0.000000e+00 : f32
    %44 = vector.broadcast %cst_28 : f32 to vector<8x64xf32>
    %45 = arith.maximumf %43, %44 : vector<8x64xf32>
    %c0_29 = arith.constant 0 : index
    %c0_30 = arith.constant 0 : index
    %46 = vector.load %arg13[%c0_29, %c0_30] : memref<64x1xf32, #tpu.memory_space<vmem>>, vector<64x1xf32>
    %cst_31 = arith.constant dense<0.000000e+00> : vector<8x1xf32>
    %47 = tpu.matmul %45, %46, %cst_31 {dimension_numbers = #tpu.dot_dimension_numbers<[1], [0], [0], [1], [0, 0, 1, 1], [], []>} : vector<8x64xf32>, vector<64x1xf32>, vector<8x1xf32> -> vector<8x1xf32>
    %c0_32 = arith.constant 0 : index
    %c0_33 = arith.constant 0 : index
    %48 = vector.load %arg14[%c0_32, %c0_33] : memref<1x1xf32, #tpu.memory_space<vmem>>, vector<1x1xf32>
    %49 = vector.broadcast %48 : vector<1x1xf32> to vector<8x1xf32>
    %50 = arith.addf %47, %49 : vector<8x1xf32>
    %c0_34 = arith.constant 0 : index
    %c0_35 = arith.constant 0 : index
    %51 = vector.load %arg5[%c0_34, %c0_35] : memref<128x1xi32, #tpu.memory_space<vmem>>, vector<128x1xi32>
    %52 = tpu.iota {dimensions = array<i32: 1>} : vector<128x16xi32>
    %53 = vector.broadcast %51 : vector<128x1xi32> to vector<128x16xi32>
    %54 = arith.cmpi eq, %53, %52 : vector<128x16xi32>
    %55 = arith.extui %54 : vector<128x16xi1> to vector<128x16xi32>
    %56 = arith.sitofp %55 : vector<128x16xi32> to vector<128x16xf32>
    %cst_36 = arith.constant dense<0.000000e+00> : vector<128x16xf32>
    %57 = tpu.matmul %56, %1, %cst_36 {dimension_numbers = #tpu.dot_dimension_numbers<[1], [0], [0], [1], [0, 0, 1, 1], [], []>} : vector<128x16xf32>, vector<16x16xf32>, vector<128x16xf32> -> vector<128x16xf32>
    %58 = vector.shape_cast %57 : vector<128x16xf32> to vector<8x16x16xf32>
    %c0_37 = arith.constant 0 : index
    %c0_38 = arith.constant 0 : index
    %c0_39 = arith.constant 0 : index
    %59 = vector.load %arg15[%c0_37, %c0_38, %c0_39] : memref<1x1x16xf32, #tpu.memory_space<vmem>>, vector<1x1x16xf32>
    %60 = vector.broadcast %59 : vector<1x1x16xf32> to vector<8x16x16xf32>
    %61 = arith.mulf %58, %60 : vector<8x16x16xf32>
    %cst_40 = arith.constant dense<0.000000e+00> : vector<8x16xf32>
    %62 = vector.multi_reduction <add>, %61, %cst_40 [2] : vector<8x16x16xf32> to vector<8x16xf32>
    %63 = vector.broadcast %50 : vector<8x1xf32> to vector<8x16xf32>
    %64 = arith.addf %63, %62 : vector<8x16xf32>
    %65 = arith.negf %64 : vector<8x16xf32>
    %66 = math.exp %65 : vector<8x16xf32>
    %cst_41 = arith.constant 1.000000e+00 : f32
    %67 = vector.broadcast %cst_41 : f32 to vector<8x16xf32>
    %68 = arith.addf %67, %66 : vector<8x16xf32>
    %69 = arith.divf %67, %68 : vector<8x16xf32>
    %c0_42 = arith.constant 0 : index
    %c0_43 = arith.constant 0 : index
    %70 = vector.load %arg16[%c0_42, %c0_43] : memref<8x16xf32, #tpu.memory_space<vmem>>, vector<8x16xf32>
    tpu.vector_store %arg16[%c0_42, %c0_43], %69 {strides = array<i32>} : memref<8x16xf32, #tpu.memory_space<vmem>>, vector<8x16xf32>,
    return
  }
  func.func @transform_0(%arg0: i32) -> (i32, i32) {
    %c0_i32 = arith.constant 0 : i32
    %c0_i32_0 = arith.constant 0 : i32
    %c0_i32_1 = arith.constant 0 : i32
    return %c0_i32, %c0_i32_0 : i32, i32
  }
  func.func @transform_1(%arg0: i32) -> (i32, i32) {
    %c0_i32 = arith.constant 0 : i32
    %c0_i32_0 = arith.constant 0 : i32
    %c0_i32_1 = arith.constant 0 : i32
    return %c0_i32, %c0_i32_0 : i32, i32
  }
  func.func @transform_2(%arg0: i32) -> (i32, i32) {
    %c0_i32 = arith.constant 0 : i32
    %c0_i32_0 = arith.constant 0 : i32
    %c0_i32_1 = arith.constant 0 : i32
    return %c0_i32, %c0_i32_0 : i32, i32
  }
  func.func @transform_3(%arg0: i32) -> (i32, i32) {
    %c0_i32 = arith.constant 0 : i32
    %c0_i32_0 = arith.constant 0 : i32
    %c0_i32_1 = arith.constant 0 : i32
    return %c0_i32, %c0_i32_0 : i32, i32
  }
  func.func @transform_4(%arg0: i32) -> (i32, i32) {
    %c0_i32 = arith.constant 0 : i32
    %c0_i32_0 = arith.constant 0 : i32
    %c0_i32_1 = arith.constant 0 : i32
    return %c0_i32, %c0_i32_0 : i32, i32
  }
  func.func @transform_5(%arg0: i32) -> (i32, i32) {
    %c0_i32 = arith.constant 0 : i32
    %c0_i32_0 = arith.constant 0 : i32
    %c0_i32_1 = arith.constant 0 : i32
    return %c0_i32, %c0_i32_0 : i32, i32
  }
  func.func @transform_6(%arg0: i32) -> (i32, i32) {
    %c0_i32 = arith.constant 0 : i32
    %c0_i32_0 = arith.constant 0 : i32
    %c0_i32_1 = arith.constant 0 : i32
    return %c0_i32, %c0_i32_0 : i32, i32
  }
  func.func @transform_7(%arg0: i32) -> (i32, i32) {
    %c0_i32 = arith.constant 0 : i32
    %c0_i32_0 = arith.constant 0 : i32
    %c0_i32_1 = arith.constant 0 : i32
    return %c0_i32, %c0_i32_0 : i32, i32
  }
  func.func @transform_8(%arg0: i32) -> (i32, i32) {
    %c0_i32 = arith.constant 0 : i32
    %c0_i32_0 = arith.constant 0 : i32
    %c0_i32_1 = arith.constant 0 : i32
    return %c0_i32, %c0_i32_0 : i32, i32
  }
  func.func @transform_9(%arg0: i32) -> (i32, i32) {
    %c0_i32 = arith.constant 0 : i32
    %c0_i32_0 = arith.constant 0 : i32
    %c0_i32_1 = arith.constant 0 : i32
    return %c0_i32, %c0_i32_0 : i32, i32
  }
  func.func @transform_10(%arg0: i32) -> (i32, i32) {
    %c0_i32 = arith.constant 0 : i32
    %c0_i32_0 = arith.constant 0 : i32
    %c0_i32_1 = arith.constant 0 : i32
    return %c0_i32, %c0_i32_0 : i32, i32
  }
  func.func @transform_11(%arg0: i32) -> (i32, i32) {
    %c0_i32 = arith.constant 0 : i32
    %c0_i32_0 = arith.constant 0 : i32
    %c0_i32_1 = arith.constant 0 : i32
    return %c0_i32, %c0_i32_0 : i32, i32
  }
  func.func @transform_12(%arg0: i32) -> (i32, i32) {
    %c0_i32 = arith.constant 0 : i32
    %c0_i32_0 = arith.constant 0 : i32
    %c0_i32_1 = arith.constant 0 : i32
    return %c0_i32, %c0_i32_0 : i32, i32
  }
  func.func @transform_13(%arg0: i32) -> (i32, i32) {
    %c0_i32 = arith.constant 0 : i32
    %c0_i32_0 = arith.constant 0 : i32
    %c0_i32_1 = arith.constant 0 : i32
    return %c0_i32, %c0_i32_0 : i32, i32
  }
  func.func @transform_14(%arg0: i32) -> (i32, i32, i32) {
    %c0_i32 = arith.constant 0 : i32
    %c0_i32_0 = arith.constant 0 : i32
    %c0_i32_1 = arith.constant 0 : i32
    %c0_i32_2 = arith.constant 0 : i32
    return %c0_i32, %c0_i32_0, %c0_i32_1 : i32, i32, i32
  }
  func.func @transform_15(%arg0: i32) -> (i32, i32) {
    %c0_i32 = arith.constant 0 : i32
    %c0_i32_0 = arith.constant 0 : i32
    %c0_i32_1 = arith.constant 0 : i32
    return %c0_i32, %c0_i32_0 : i32, i32
  }
}

</mosaic_0001>

<llo_original>
// kernel: tpu_custom_call.1
$region0: #{tpu_custom_call.1}
  #allocation0 [shape = 'u32[]', space=smem, size = 0x4, offset = 0x4, fixed_abs, tag = 'smem constant byte address 0x4 - core index']
  #allocation1 [shape = 'u32[72,128]{1,0:T(1,128)}', space=vmem, size = 0x9000, scoped, tag = 'internal scratch']
  #allocation2 [shape = 'f32[1,1]{1,0:T(1,128)S(1)}', space=vmem, size = 0x200, scoped, tag = 'scoped memory for tpu_custom_call.1']
  %s0 = inlined_call_operand.vmem [shape: s32[8,1], index: 0, kind: input, shape index: {}]
  %s1 = inlined_call_operand.vmem [shape: s32[8,1], index: 1, kind: input, shape index: {}]
  %s2 = inlined_call_operand.vmem [shape: s32[8,1], index: 2, kind: input, shape index: {}]
  %s3 = inlined_call_operand.vmem [shape: s32[8,1], index: 3, kind: input, shape index: {}]
  %s4 = inlined_call_operand.vmem [shape: s32[128,1], index: 4, kind: input, shape index: {}]
  %s5 = inlined_call_operand.vmem [shape: f32[64,32], index: 5, kind: input, shape index: {}]
  %s6 = inlined_call_operand.vmem [shape: f32[16,16], index: 6, kind: input, shape index: {}]
  %s7 = inlined_call_operand.vmem [shape: f32[32,64], index: 7, kind: input, shape index: {}]
  %s8 = inlined_call_operand.vmem [shape: f32[16,64], index: 8, kind: input, shape index: {}]
  %s9 = inlined_call_operand.vmem [shape: f32[32,64], index: 9, kind: input, shape index: {}]
  %s10 = inlined_call_operand.vmem [shape: f32[16,64], index: 10, kind: input, shape index: {}]
  %s11 = inlined_call_operand.vmem [shape: f32[1,64], index: 11, kind: input, shape index: {}]
  %s12 = inlined_call_operand.vmem [shape: f32[64,1], index: 12, kind: input, shape index: {}]
  %s13 = inlined_call_operand.<no memory space> [shape: f32[1,1], index: 13, kind: input, shape index: {}]
  %s14 = inlined_call_operand.vmem [shape: f32[1,1,16], index: 14, kind: input, shape index: {}]
  %s15 = inlined_call_operand.hbm [shape: f32[8,16], index: 15, kind: output, shape index: {}]
  %s16 = sld [smem:[#allocation0]]
  $region70: #{tpu_custom_call.1} parent=0
    _
  %s18 = ssub.s32 1, %s16
  %s19 = scalar_select 0, %s18, %s16
  %v20 = vstv %s13
  %21 = vst [vmem:[#allocation2] sm:$0x1] %v20
  $region1: #{tpu_custom_call.1} parent=0
    #allocation3 [shape = 'u8[4096]{0}', space=vmem, size = 0x1000, scoped, tag = 'output window, operand 0, single buffered']
    #allocation4 [shape = 's32[1]{0}', space=sflag, size = 0x4, scoped, tag = 'scoped memory for tpu_custom_call.1']
    %22 = vsyncpa [#allocation4], 0
    // Predicated region
    $region2: #{tpu_custom_call.1} parent=1 // pred_check
      _
    $region3: #{tpu_custom_call.1} parent=1 // pred_check_branch
      %24 = sbr.rel (0) target = $region5
    $region4: #{tpu_custom_call.1} parent=1 // pred_region
      _
    $region5: #{tpu_custom_call.1} parent=1 // pred_fallthru
      _
    // Predicated region
    $region6: #{tpu_custom_call.1} parent=1 // pred_check
      _
    $region7: #{tpu_custom_call.1} parent=1 // pred_check_branch
      %26 = sbr.rel (0) target = $region9
    $region8: #{tpu_custom_call.1} parent=1 // pred_region
      _
    $region9: #{tpu_custom_call.1} parent=1 // pred_fallthru
      _
    // Predicated region
    $region10: #{tpu_custom_call.1} parent=1 // pred_check
      _
    $region11: #{tpu_custom_call.1} parent=1 // pred_check_branch
      %28 = sbr.rel (0) target = $region13
    $region12: #{tpu_custom_call.1} parent=1 // pred_region
      _
    $region13: #{tpu_custom_call.1} parent=1 // pred_fallthru
      _
    // Predicated region
    $region14: #{tpu_custom_call.1} parent=1 // pred_check
      _
    $region15: #{tpu_custom_call.1} parent=1 // pred_check_branch
      %30 = sbr.rel (0) target = $region17
    $region16: #{tpu_custom_call.1} parent=1 // pred_region
      _
    $region17: #{tpu_custom_call.1} parent=1 // pred_fallthru
      _
    // Predicated region
    $region18: #{tpu_custom_call.1} parent=1 // pred_check
      _
    $region19: #{tpu_custom_call.1} parent=1 // pred_check_branch
      %32 = sbr.rel (0) target = $region21
    $region20: #{tpu_custom_call.1} parent=1 // pred_region
      _
    $region21: #{tpu_custom_call.1} parent=1 // pred_fallthru
      _
    // Predicated region
    $region22: #{tpu_custom_call.1} parent=1 // pred_check
      _
    $region23: #{tpu_custom_call.1} parent=1 // pred_check_branch
      %34 = sbr.rel (0) target = $region25
    $region24: #{tpu_custom_call.1} parent=1 // pred_region
      _
    $region25: #{tpu_custom_call.1} parent=1 // pred_fallthru
      _
    // Predicated region
    $region26: #{tpu_custom_call.1} parent=1 // pred_check
      _
    $region27: #{tpu_custom_call.1} parent=1 // pred_check_branch
      %36 = sbr.rel (0) target = $region29
    $region28: #{tpu_custom_call.1} parent=1 // pred_region
      _
    $region29: #{tpu_custom_call.1} parent=1 // pred_fallthru
      _
    // Predicated region
    $region30: #{tpu_custom_call.1} parent=1 // pred_check
      _
    $region31: #{tpu_custom_call.1} parent=1 // pred_check_branch
      %38 = sbr.rel (0) target = $region33
    $region32: #{tpu_custom_call.1} parent=1 // pred_region
      _
    $region33: #{tpu_custom_call.1} parent=1 // pred_fallthru
      _
    // Predicated region
    $region34: #{tpu_custom_call.1} parent=1 // pred_check
      _
    $region35: #{tpu_custom_call.1} parent=1 // pred_check_branch
      %40 = sbr.rel (0) target = $region37
    $region36: #{tpu_custom_call.1} parent=1 // pred_region
      _
    $region37: #{tpu_custom_call.1} parent=1 // pred_fallthru
      _
    // Predicated region
    $region38: #{tpu_custom_call.1} parent=1 // pred_check
      _
    $region39: #{tpu_custom_call.1} parent=1 // pred_check_branch
      %42 = sbr.rel (0) target = $region41
    $region40: #{tpu_custom_call.1} parent=1 // pred_region
      _
    $region41: #{tpu_custom_call.1} parent=1 // pred_fallthru
      _
    // Predicated region
    $region42: #{tpu_custom_call.1} parent=1 // pred_check
      _
    $region43: #{tpu_custom_call.1} parent=1 // pred_check_branch
      %44 = sbr.rel (0) target = $region45
    $region44: #{tpu_custom_call.1} parent=1 // pred_region
      _
    $region45: #{tpu_custom_call.1} parent=1 // pred_fallthru
      _
    // Predicated region
    $region46: #{tpu_custom_call.1} parent=1 // pred_check
      _
    $region47: #{tpu_custom_call.1} parent=1 // pred_check_branch
      %46 = sbr.rel (0) target = $region49
    $region48: #{tpu_custom_call.1} parent=1 // pred_region
      _
    $region49: #{tpu_custom_call.1} parent=1 // pred_fallthru
      _
    // Predicated region
    $region50: #{tpu_custom_call.1} parent=1 // pred_check
      _
    $region51: #{tpu_custom_call.1} parent=1 // pred_check_branch
      %48 = sbr.rel (0) target = $region53
    $region52: #{tpu_custom_call.1} parent=1 // pred_region
      _
    $region53: #{tpu_custom_call.1} parent=1 // pred_fallthru
      _
    // Predicated region
    $region54: #{tpu_custom_call.1} parent=1 // pred_check
      _
    $region55: #{tpu_custom_call.1} parent=1 // pred_check_branch
      %50 = sbr.rel (0) target = $region57
    $region56: #{tpu_custom_call.1} parent=1 // pred_region
      _
    $region57: #{tpu_custom_call.1} parent=1 // pred_fallthru
      _
    // Predicated region
    $region58: #{tpu_custom_call.1} parent=1 // pred_check
      _
    $region59: #{tpu_custom_call.1} parent=1 // pred_check_branch
      %52 = sbr.rel (0) target = $region61
    $region60: #{tpu_custom_call.1} parent=1 // pred_region
      _
    $region61: #{tpu_custom_call.1} parent=1 // pred_fallthru
      _
    %v53 = vld [vmem:[%s5] sm:$0xff]
    %v54 = vld [vmem:[%s5 + $0x8] sm:$0xff]
    %v55 = vld [vmem:[%s5 + $0x10] sm:$0xff]
    %v56 = vld [vmem:[%s5 + $0x18] sm:$0xff]
    %v57 = vld [vmem:[%s5 + $0x20] sm:$0xff]
    %v58 = vld [vmem:[%s5 + $0x28] sm:$0xff]
    %v59 = vld [vmem:[%s5 + $0x30] sm:$0xff]
    %v60 = vld [vmem:[%s5 + $0x38] sm:$0xff]
    %v61 = vld [vmem:[%s6] sm:$0xff]
    %v62 = vld [vmem:[%s6 + $0x8] sm:$0xff]
    %v63 = vld [vmem:[%s0] sm:$0xff]
    %v64 = vlaneseq
    %v65 = vand.u32 %v64, 127
    %66 = vset.pattern.permute.xlu0 0
    %67 = vperm.xlu0 %66, %v63
    %v68 = vpop.permute.xlu0 %67
    %vm69 = vcmp.eq.s32.totalorder %v68, %v65
    %v70 = vsel %vm69, 1, 0
    %v71 = vcvt.s32.f32 %v70
    %vm72 = vcmask 523264
    %v74 = vsel %vm72, %v71, 0
    %76 = vmatpush.msra.mxu0 0.0
    %77 = vmatpush.msra.mxu0 0.0
    %78 = vmatpush.msra.mxu0 0.0
    %79 = vmatpush.msra.mxu0 0.0
    %80 = vmatpush.msra.mxu0 0.0
    %81 = vmatpush.msra.mxu0 0.0
    %82 = vmatpush.msra.mxu0 0.0
    %83 = vmatpush.msra.mxu0 0.0
    %84 = vmatpush.msra.mxu0 %v60
    %85 = vmatpush.msra.mxu0 %v59
    %86 = vmatpush.msra.mxu0 %v58
    %87 = vmatpush.msra.mxu0 %v57
    %88 = vmatpush.msra.mxu0 %v56
    %89 = vmatpush.msra.mxu0 %v55
    %90 = vmatpush.msra.mxu0 %v54
    %91 = vmatpush.msra.mxu0 %v53
    %92 = vmatmul.f32.gmra.mxu0 %v74
    %v93 = vpop.f32.mrf.mxu0
    %v94 = vadd.f32 0.0, %v93
    %95 = vdwg.mxu0
    %v96 = vld [vmem:[%s1] sm:$0xff]
    %97 = vset.pattern.permute.xlu0 0
    %98 = vperm.xlu0 %97, %v96
    %v99 = vpop.permute.xlu0 %98
    %vm100 = vcmp.eq.s32.totalorder %v99, %v65
    %v101 = vsel %vm100, 1, 0
    %v102 = vcvt.s32.f32 %v101
    %v104 = vsel %vm72, %v102, 0
    %106 = vmatpush.msra.mxu0 0.0
    %107 = vmatpush.msra.mxu0 0.0
    %108 = vmatpush.msra.mxu0 0.0
    %109 = vmatpush.msra.mxu0 0.0
    %110 = vmatpush.msra.mxu0 0.0
    %111 = vmatpush.msra.mxu0 0.0
    %112 = vmatpush.msra.mxu0 0.0
    %113 = vmatpush.msra.mxu0 0.0
    %114 = vmatpush.msra.mxu0 %v60
    %115 = vmatpush.msra.mxu0 %v59
    %116 = vmatpush.msra.mxu0 %v58
    %117 = vmatpush.msra.mxu0 %v57
    %118 = vmatpush.msra.mxu0 %v56
    %119 = vmatpush.msra.mxu0 %v55
    %120 = vmatpush.msra.mxu0 %v54
    %121 = vmatpush.msra.mxu0 %v53
    %122 = vmatmul.f32.gmra.mxu0 %v104
    %v123 = vpop.f32.mrf.mxu0
    %v124 = vadd.f32 0.0, %v123
    %125 = vdwg.mxu0
    %v126 = vld [vmem:[%s2] sm:$0xff]
    %127 = vset.pattern.permute.xlu0 0
    %128 = vperm.xlu0 %127, %v126
    %v129 = vpop.permute.xlu0 %128
    %vm130 = vcmp.eq.s32.totalorder %v129, %v65
    %v131 = vsel %vm130, 1, 0
    %v132 = vcvt.s32.f32 %v131
    %vm133 = vcmask 130048
    %v135 = vsel %vm133, %v132, 0
    %137 = vmatpush.msra.mxu0 0.0
    %138 = vmatpush.msra.mxu0 0.0
    %139 = vmatpush.msra.mxu0 0.0
    %140 = vmatpush.msra.mxu0 0.0
    %141 = vmatpush.msra.mxu0 0.0
    %142 = vmatpush.msra.mxu0 0.0
    %143 = vmatpush.msra.mxu0 0.0
    %144 = vmatpush.msra.mxu0 0.0
    %145 = vmatpush.msra.mxu0 0.0
    %146 = vmatpush.msra.mxu0 0.0
    %147 = vmatpush.msra.mxu0 0.0
    %148 = vmatpush.msra.mxu0 0.0
    %149 = vmatpush.msra.mxu0 0.0
    %150 = vmatpush.msra.mxu0 0.0
    %151 = vmatpush.msra.mxu0 %v62
    %152 = vmatpush.msra.mxu0 %v61
    %153 = vmatmul.f32.gmra.mxu0 %v135
    %v154 = vpop.f32.mrf.mxu0
    %v155 = vadd.f32 0.0, %v154
    %156 = vdwg.mxu0
    %v157 = vld [vmem:[%s3] sm:$0xff]
    %158 = vset.pattern.permute.xlu0 0
    %159 = vperm.xlu0 %158, %v157
    %v160 = vpop.permute.xlu0 %159
    %vm161 = vcmp.eq.s32.totalorder %v160, %v65
    %v162 = vsel %vm161, 1, 0
    %v163 = vcvt.s32.f32 %v162
    %v165 = vsel %vm133, %v163, 0
    %167 = vmatpush.msra.mxu0 0.0
    %168 = vmatpush.msra.mxu0 0.0
    %169 = vmatpush.msra.mxu0 0.0
    %170 = vmatpush.msra.mxu0 0.0
    %171 = vmatpush.msra.mxu0 0.0
    %172 = vmatpush.msra.mxu0 0.0
    %173 = vmatpush.msra.mxu0 0.0
    %174 = vmatpush.msra.mxu0 0.0
    %175 = vmatpush.msra.mxu0 0.0
    %176 = vmatpush.msra.mxu0 0.0
    %177 = vmatpush.msra.mxu0 0.0
    %178 = vmatpush.msra.mxu0 0.0
    %179 = vmatpush.msra.mxu0 0.0
    %180 = vmatpush.msra.mxu0 0.0
    %181 = vmatpush.msra.mxu0 %v62
    %182 = vmatpush.msra.mxu0 %v61
    %183 = vmatmul.f32.gmra.mxu0 %v165
    %v184 = vpop.f32.mrf.mxu0
    %v185 = vadd.f32 0.0, %v184
    %186 = vdwg.mxu0
    %v187 = vld [vmem:[%s7] sm:$0xff]
    %v188 = vld [vmem:[%s7 + $0x8] sm:$0xff]
    %v189 = vld [vmem:[%s7 + $0x10] sm:$0xff]
    %v190 = vld [vmem:[%s7 + $0x18] sm:$0xff]
    %v191 = vld [vmem:[%s8] sm:$0xff]
    %v192 = vld [vmem:[%s8 + $0x8] sm:$0xff]
    %v194 = vsel %vm133, %v155, 0
    %196 = vmatpush.msra.mxu0 0.0
    %197 = vmatpush.msra.mxu0 0.0
    %198 = vmatpush.msra.mxu0 0.0
    %199 = vmatpush.msra.mxu0 0.0
    %200 = vmatpush.msra.mxu0 0.0
    %201 = vmatpush.msra.mxu0 0.0
    %202 = vmatpush.msra.mxu0 0.0
    %203 = vmatpush.msra.mxu0 0.0
    %204 = vmatpush.msra.mxu0 0.0
    %205 = vmatpush.msra.mxu0 0.0
    %206 = vmatpush.msra.mxu0 0.0
    %207 = vmatpush.msra.mxu0 0.0
    %208 = vmatpush.msra.mxu0 0.0
    %209 = vmatpush.msra.mxu0 0.0
    %210 = vmatpush.msra.mxu0 %v192
    %211 = vmatpush.msra.mxu0 %v191
    %212 = vmatmul.f32.gmra.mxu0 %v194
    %v213 = vpop.f32.mrf.mxu0
    %v214 = vadd.f32 0.0, %v213
    %215 = vdwg.mxu0
    %vm216 = vcmask 261120
    %v218 = vsel %vm216, %v94, 0
    %220 = vmatpush.msra.mxu0 0.0
    %221 = vmatpush.msra.mxu0 0.0
    %222 = vmatpush.msra.mxu0 0.0
    %223 = vmatpush.msra.mxu0 0.0
    %224 = vmatpush.msra.mxu0 0.0
    %225 = vmatpush.msra.mxu0 0.0
    %226 = vmatpush.msra.mxu0 0.0
    %227 = vmatpush.msra.mxu0 0.0
    %228 = vmatpush.msra.mxu0 0.0
    %229 = vmatpush.msra.mxu0 0.0
    %230 = vmatpush.msra.mxu0 0.0
    %231 = vmatpush.msra.mxu0 0.0
    %232 = vmatpush.msra.mxu0 %v190
    %233 = vmatpush.msra.mxu0 %v189
    %234 = vmatpush.msra.mxu0 %v188
    %235 = vmatpush.msra.mxu0 %v187
    %236 = vmatmul.f32.gmra.mxu0 %v218
    %v237 = vpop.f32.mrf.mxu0
    %v238 = vadd.f32 %v214, %v237
    %239 = vdwg.mxu0
    %v240 = vld [vmem:[%s9] sm:$0xff]
    %v241 = vld [vmem:[%s9 + $0x8] sm:$0xff]
    %v242 = vld [vmem:[%s9 + $0x10] sm:$0xff]
    %v243 = vld [vmem:[%s9 + $0x18] sm:$0xff]
    %v245 = vsel %vm216, %v124, 0
    %247 = vmatpush.msra.mxu0 0.0
    %248 = vmatpush.msra.mxu0 0.0
    %249 = vmatpush.msra.mxu0 0.0
    %250 = vmatpush.msra.mxu0 0.0
    %251 = vmatpush.msra.mxu0 0.0
    %252 = vmatpush.msra.mxu0 0.0
    %253 = vmatpush.msra.mxu0 0.0
    %254 = vmatpush.msra.mxu0 0.0
    %255 = vmatpush.msra.mxu0 0.0
    %256 = vmatpush.msra.mxu0 0.0
    %257 = vmatpush.msra.mxu0 0.0
    %258 = vmatpush.msra.mxu0 0.0
    %259 = vmatpush.msra.mxu0 %v243
    %260 = vmatpush.msra.mxu0 %v242
    %261 = vmatpush.msra.mxu0 %v241
    %262 = vmatpush.msra.mxu0 %v240
    %263 = vmatmul.f32.gmra.mxu0 %v245
    %v264 = vpop.f32.mrf.mxu0
    %v265 = vadd.f32 0.0, %v264
    %266 = vdwg.mxu0
    %v267 = vadd.f32 %v238, %v265
    %v268 = vld [vmem:[%s10] sm:$0xff]
    %v269 = vld [vmem:[%s10 + $0x8] sm:$0xff]
    %v271 = vsel %vm133, %v185, 0
    %273 = vmatpush.msra.mxu0 0.0
    %274 = vmatpush.msra.mxu0 0.0
    %275 = vmatpush.msra.mxu0 0.0
    %276 = vmatpush.msra.mxu0 0.0
    %277 = vmatpush.msra.mxu0 0.0
    %278 = vmatpush.msra.mxu0 0.0
    %279 = vmatpush.msra.mxu0 0.0
    %280 = vmatpush.msra.mxu0 0.0
    %281 = vmatpush.msra.mxu0 0.0
    %282 = vmatpush.msra.mxu0 0.0
    %283 = vmatpush.msra.mxu0 0.0
    %284 = vmatpush.msra.mxu0 0.0
    %285 = vmatpush.msra.mxu0 0.0
    %286 = vmatpush.msra.mxu0 0.0
    %287 = vmatpush.msra.mxu0 %v269
    %288 = vmatpush.msra.mxu0 %v268
    %289 = vmatmul.f32.gmra.mxu0 %v271
    %v290 = vpop.f32.mrf.mxu0
    %v291 = vadd.f32 0.0, %v290
    %292 = vdwg.mxu0
    %v293 = vadd.f32 %v267, %v291
    %v294 = vld [vmem:[%s11] sm:$0x1]
    %v296 = vperm.slane %v294, 0
    %v298 = vadd.f32 %v293, %v296
    %v299 = vmax.f32 %v298, 0.0
    %v300 = vld [vmem:[%s12] sm:$0xff]
    %v301 = vld [vmem:[%s12 + $0x8] sm:$0xff]
    %v302 = vld [vmem:[%s12 + $0x10] sm:$0xff]
    %v303 = vld [vmem:[%s12 + $0x18] sm:$0xff]
    %v304 = vld [vmem:[%s12 + $0x20] sm:$0xff]
    %v305 = vld [vmem:[%s12 + $0x28] sm:$0xff]
    %v306 = vld [vmem:[%s12 + $0x30] sm:$0xff]
    %v307 = vld [vmem:[%s12 + $0x38] sm:$0xff]
    %v308 = vld [vmem:[#allocation2] sm:$0x1]
    %v310 = vperm.slane %v308, 0
    %v313 = vsel %vm72, %v299, 0
    %315 = vmatpush.msra.mxu0 0.0
    %316 = vmatpush.msra.mxu0 0.0
    %317 = vmatpush.msra.mxu0 0.0
    %318 = vmatpush.msra.mxu0 0.0
    %319 = vmatpush.msra.mxu0 0.0
    %320 = vmatpush.msra.mxu0 0.0
    %321 = vmatpush.msra.mxu0 0.0
    %322 = vmatpush.msra.mxu0 0.0
    %323 = vmatpush.msra.mxu0 %v307
    %324 = vmatpush.msra.mxu0 %v306
    %325 = vmatpush.msra.mxu0 %v305
    %326 = vmatpush.msra.mxu0 %v304
    %327 = vmatpush.msra.mxu0 %v303
    %328 = vmatpush.msra.mxu0 %v302
    %329 = vmatpush.msra.mxu0 %v301
    %330 = vmatpush.msra.mxu0 %v300
    %331 = vmatmul.f32.gmra.mxu0 %v313
    %v332 = vpop.f32.mrf.mxu0
    %v333 = vadd.f32 %v310, %v332
    %334 = vdwg.mxu0
    %v335 = vld [vmem:[%s4] sm:$0xff]
    %v336 = vld [vmem:[%s4 + $0x8] sm:$0xff]
    %v337 = vld [vmem:[%s4 + $0x10] sm:$0xff]
    %v338 = vld [vmem:[%s4 + $0x18] sm:$0xff]
    %v339 = vld [vmem:[%s4 + $0x20] sm:$0xff]
    %v340 = vld [vmem:[%s4 + $0x28] sm:$0xff]
    %v341 = vld [vmem:[%s4 + $0x30] sm:$0xff]
    %v342 = vld [vmem:[%s4 + $0x38] sm:$0xff]
    %v343 = vld [vmem:[%s4 + $0x40] sm:$0xff]
    %v344 = vld [vmem:[%s4 + $0x48] sm:$0xff]
    %v345 = vld [vmem:[%s4 + $0x50] sm:$0xff]
    %v346 = vld [vmem:[%s4 + $0x58] sm:$0xff]
    %v347 = vld [vmem:[%s4 + $0x60] sm:$0xff]
    %v348 = vld [vmem:[%s4 + $0x68] sm:$0xff]
    %v349 = vld [vmem:[%s4 + $0x70] sm:$0xff]
    %v350 = vld [vmem:[%s4 + $0x78] sm:$0xff]
    %351 = vset.pattern.permute.xlu0 0
    %352 = vperm.xlu0 %351, %v335
    %v353 = vpop.permute.xlu0 %352
    %354 = vset.pattern.permute.xlu0 0
    %355 = vperm.xlu0 %354, %v336
    %v356 = vpop.permute.xlu0 %355
    %357 = vset.pattern.permute.xlu0 0
    %358 = vperm.xlu0 %357, %v337
    %v359 = vpop.permute.xlu0 %358
    %360 = vset.pattern.permute.xlu0 0
    %361 = vperm.xlu0 %360, %v338
    %v362 = vpop.permute.xlu0 %361
    %363 = vset.pattern.permute.xlu0 0
    %364 = vperm.xlu0 %363, %v339
    %v365 = vpop.permute.xlu0 %364
    %366 = vset.pattern.permute.xlu0 0
    %367 = vperm.xlu0 %366, %v340
    %v368 = vpop.permute.xlu0 %367
    %369 = vset.pattern.permute.xlu0 0
    %370 = vperm.xlu0 %369, %v341
    %v371 = vpop.permute.xlu0 %370
    %372 = vset.pattern.permute.xlu0 0
    %373 = vperm.xlu0 %372, %v342
    %v374 = vpop.permute.xlu0 %373
    %375 = vset.pattern.permute.xlu0 0
    %376 = vperm.xlu0 %375, %v343
    %v377 = vpop.permute.xlu0 %376
    %378 = vset.pattern.permute.xlu0 0
    %379 = vperm.xlu0 %378, %v344
    %v380 = vpop.permute.xlu0 %379
    %381 = vset.pattern.permute.xlu0 0
    %382 = vperm.xlu0 %381, %v345
    %v383 = vpop.permute.xlu0 %382
    %384 = vset.pattern.permute.xlu0 0
    %385 = vperm.xlu0 %384, %v346
    %v386 = vpop.permute.xlu0 %385
    %387 = vset.pattern.permute.xlu0 0
    %388 = vperm.xlu0 %387, %v347
    %v389 = vpop.permute.xlu0 %388
    %390 = vset.pattern.permute.xlu0 0
    %391 = vperm.xlu0 %390, %v348
    %v392 = vpop.permute.xlu0 %391
    %393 = vset.pattern.permute.xlu0 0
    %394 = vperm.xlu0 %393, %v349
    %v395 = vpop.permute.xlu0 %394
    %396 = vset.pattern.permute.xlu0 0
    %397 = vperm.xlu0 %396, %v350
    %v398 = vpop.permute.xlu0 %397
    %vm399 = vcmp.eq.s32.totalorder %v353, %v65
    %vm400 = vcmp.eq.s32.totalorder %v356, %v65
    %vm401 = vcmp.eq.s32.totalorder %v359, %v65
    %vm402 = vcmp.eq.s32.totalorder %v362, %v65
    %vm403 = vcmp.eq.s32.totalorder %v365, %v65
    %vm404 = vcmp.eq.s32.totalorder %v368, %v65
    %vm405 = vcmp.eq.s32.totalorder %v371, %v65
    %vm406 = vcmp.eq.s32.totalorder %v374, %v65
    %vm407 = vcmp.eq.s32.totalorder %v377, %v65
    %vm408 = vcmp.eq.s32.totalorder %v380, %v65
    %vm409 = vcmp.eq.s32.totalorder %v383, %v65
    %vm410 = vcmp.eq.s32.totalorder %v386, %v65
    %vm411 = vcmp.eq.s32.totalorder %v389, %v65
    %vm412 = vcmp.eq.s32.totalorder %v392, %v65
    %vm413 = vcmp.eq.s32.totalorder %v395, %v65
    %vm414 = vcmp.eq.s32.totalorder %v398, %v65
    %v415 = vsel %vm399, 1, 0
    %v416 = vsel %vm400, 1, 0
    %v417 = vsel %vm401, 1, 0
    %v418 = vsel %vm402, 1, 0
    %v419 = vsel %vm403, 1, 0
    %v420 = vsel %vm404, 1, 0
    %v421 = vsel %vm405, 1, 0
    %v422 = vsel %vm406, 1, 0
    %v423 = vsel %vm407, 1, 0
    %v424 = vsel %vm408, 1, 0
    %v425 = vsel %vm409, 1, 0
    %v426 = vsel %vm410, 1, 0
    %v427 = vsel %vm411, 1, 0
    %v428 = vsel %vm412, 1, 0
    %v429 = vsel %vm413, 1, 0
    %v430 = vsel %vm414, 1, 0
    %v431 = vcvt.s32.f32 %v415
    %v432 = vcvt.s32.f32 %v416
    %v433 = vcvt.s32.f32 %v417
    %v434 = vcvt.s32.f32 %v418
    %v435 = vcvt.s32.f32 %v419
    %v436 = vcvt.s32.f32 %v420
    %v437 = vcvt.s32.f32 %v421
    %v438 = vcvt.s32.f32 %v422
    %v439 = vcvt.s32.f32 %v423
    %v440 = vcvt.s32.f32 %v424
    %v441 = vcvt.s32.f32 %v425
    %v442 = vcvt.s32.f32 %v426
    %v443 = vcvt.s32.f32 %v427
    %v444 = vcvt.s32.f32 %v428
    %v445 = vcvt.s32.f32 %v429
    %v446 = vcvt.s32.f32 %v430
    %v448 = vsel %vm133, %v431, 0
    %v451 = vsel %vm133, %v432, 0
    %v454 = vsel %vm133, %v433, 0
    %v457 = vsel %vm133, %v434, 0
    %v460 = vsel %vm133, %v435, 0
    %v463 = vsel %vm133, %v436, 0
    %v466 = vsel %vm133, %v437, 0
    %v469 = vsel %vm133, %v438, 0
    %v472 = vsel %vm133, %v439, 0
    %v475 = vsel %vm133, %v440, 0
    %v478 = vsel %vm133, %v441, 0
    %v481 = vsel %vm133, %v442, 0
    %v484 = vsel %vm133, %v443, 0
    %v487 = vsel %vm133, %v444, 0
    %v490 = vsel %vm133, %v445, 0
    %v493 = vsel %vm133, %v446, 0
    %495 = vmatpush.msra.mxu0 0.0
    %496 = vmatpush.msra.mxu0 0.0
    %497 = vmatpush.msra.mxu0 0.0
    %498 = vmatpush.msra.mxu0 0.0
    %499 = vmatpush.msra.mxu0 0.0
    %500 = vmatpush.msra.mxu0 0.0
    %501 = vmatpush.msra.mxu0 0.0
    %502 = vmatpush.msra.mxu0 0.0
    %503 = vmatpush.msra.mxu0 0.0
    %504 = vmatpush.msra.mxu0 0.0
    %505 = vmatpush.msra.mxu0 0.0
    %506 = vmatpush.msra.mxu0 0.0
    %507 = vmatpush.msra.mxu0 0.0
    %508 = vmatpush.msra.mxu0 0.0
    %509 = vmatpush.msra.mxu0 %v62
    %510 = vmatpush.msra.mxu0 %v61
    %511 = vmatmul.f32.gmra.mxu0 %v448
    %v512 = vpop.f32.mrf.mxu0
    %v513 = vadd.f32 0.0, %v512
    %514 = vmatmul.f32.gmra.mxu0 %v451
    %v515 = vpop.f32.mrf.mxu0
    %v516 = vadd.f32 0.0, %v515
    %517 = vmatmul.f32.gmra.mxu0 %v454
    %v518 = vpop.f32.mrf.mxu0
    %v519 = vadd.f32 0.0, %v518
    %520 = vmatmul.f32.gmra.mxu0 %v457
    %v521 = vpop.f32.mrf.mxu0
    %v522 = vadd.f32 0.0, %v521
    %523 = vmatmul.f32.gmra.mxu0 %v460
    %v524 = vpop.f32.mrf.mxu0
    %v525 = vadd.f32 0.0, %v524
    %526 = vmatmul.f32.gmra.mxu0 %v463
    %v527 = vpop.f32.mrf.mxu0
    %v528 = vadd.f32 0.0, %v527
    %529 = vmatmul.f32.gmra.mxu0 %v466
    %v530 = vpop.f32.mrf.mxu0
    %v531 = vadd.f32 0.0, %v530
    %532 = vmatmul.f32.gmra.mxu0 %v469
    %v533 = vpop.f32.mrf.mxu0
    %v534 = vadd.f32 0.0, %v533
    %535 = vmatmul.f32.gmra.mxu0 %v472
    %v536 = vpop.f32.mrf.mxu0
    %v537 = vadd.f32 0.0, %v536
    %538 = vmatmul.f32.gmra.mxu0 %v475
    %v539 = vpop.f32.mrf.mxu0
    %v540 = vadd.f32 0.0, %v539
    %541 = vmatmul.f32.gmra.mxu0 %v478
    %v542 = vpop.f32.mrf.mxu0
    %v543 = vadd.f32 0.0, %v542
    %544 = vmatmul.f32.gmra.mxu0 %v481
    %v545 = vpop.f32.mrf.mxu0
    %v546 = vadd.f32 0.0, %v545
    %547 = vmatmul.f32.gmra.mxu0 %v484
    %v548 = vpop.f32.mrf.mxu0
    %v549 = vadd.f32 0.0, %v548
    %550 = vmatmul.f32.gmra.mxu0 %v487
    %v551 = vpop.f32.mrf.mxu0
    %v552 = vadd.f32 0.0, %v551
    %553 = vmatmul.f32.gmra.mxu0 %v490
    %v554 = vpop.f32.mrf.mxu0
    %v555 = vadd.f32 0.0, %v554
    %556 = vmatmul.f32.gmra.mxu0 %v493
    %v557 = vpop.f32.mrf.mxu0
    %v558 = vadd.f32 0.0, %v557
    %559 = vdwg.mxu0
    %v560 = vld [vmem:[%s14] sm:$0x1]
    %v562 = vperm.slane %v560, 0
    %v564 = vmul.f32 %v513, %v562
    %v565 = vmul.f32 %v516, %v562
    %v566 = vmul.f32 %v519, %v562
    %v567 = vmul.f32 %v522, %v562
    %v568 = vmul.f32 %v525, %v562
    %v569 = vmul.f32 %v528, %v562
    %v570 = vmul.f32 %v531, %v562
    %v571 = vmul.f32 %v534, %v562
    %v572 = vmul.f32 %v537, %v562
    %v573 = vmul.f32 %v540, %v562
    %v574 = vmul.f32 %v543, %v562
    %v575 = vmul.f32 %v546, %v562
    %v576 = vmul.f32 %v549, %v562
    %v577 = vmul.f32 %v552, %v562
    %v578 = vmul.f32 %v555, %v562
    %v579 = vmul.f32 %v558, %v562
    %v580 = vsel %vm133, %v564, 0.0
    %581 = vadd.xlane.f32.xlu0 %v580
    %v582 = vpop.xlane.xlu0 %581
    %v583 = vsel %vm133, %v565, 0.0
    %584 = vadd.xlane.f32.xlu0 %v583
    %v585 = vpop.xlane.xlu0 %584
    %v586 = vsel %vm133, %v566, 0.0
    %587 = vadd.xlane.f32.xlu0 %v586
    %v588 = vpop.xlane.xlu0 %587
    %v589 = vsel %vm133, %v567, 0.0
    %590 = vadd.xlane.f32.xlu0 %v589
    %v591 = vpop.xlane.xlu0 %590
    %v592 = vsel %vm133, %v568, 0.0
    %593 = vadd.xlane.f32.xlu0 %v592
    %v594 = vpop.xlane.xlu0 %593
    %v595 = vsel %vm133, %v569, 0.0
    %596 = vadd.xlane.f32.xlu0 %v595
    %v597 = vpop.xlane.xlu0 %596
    %v598 = vsel %vm133, %v570, 0.0
    %599 = vadd.xlane.f32.xlu0 %v598
    %v600 = vpop.xlane.xlu0 %599
    %v601 = vsel %vm133, %v571, 0.0
    %602 = vadd.xlane.f32.xlu0 %v601
    %v603 = vpop.xlane.xlu0 %602
    %v604 = vsel %vm133, %v572, 0.0
    %605 = vadd.xlane.f32.xlu0 %v604
    %v606 = vpop.xlane.xlu0 %605
    %v607 = vsel %vm133, %v573, 0.0
    %608 = vadd.xlane.f32.xlu0 %v607
    %v609 = vpop.xlane.xlu0 %608
    %v610 = vsel %vm133, %v574, 0.0
    %611 = vadd.xlane.f32.xlu0 %v610
    %v612 = vpop.xlane.xlu0 %611
    %v613 = vsel %vm133, %v575, 0.0
    %614 = vadd.xlane.f32.xlu0 %v613
    %v615 = vpop.xlane.xlu0 %614
    %v616 = vsel %vm133, %v576, 0.0
    %617 = vadd.xlane.f32.xlu0 %v616
    %v618 = vpop.xlane.xlu0 %617
    %v619 = vsel %vm133, %v577, 0.0
    %620 = vadd.xlane.f32.xlu0 %v619
    %v621 = vpop.xlane.xlu0 %620
    %v622 = vsel %vm133, %v578, 0.0
    %623 = vadd.xlane.f32.xlu0 %v622
    %v624 = vpop.xlane.xlu0 %623
    %v625 = vsel %vm133, %v579, 0.0
    %626 = vadd.xlane.f32.xlu0 %v625
    %v627 = vpop.xlane.xlu0 %626
    %629 = vset.pattern.permute.xlu0 0
    %630 = vperm.xlu0 %629, %v333
    %v631 = vpop.permute.xlu0 %630
    %v649 = vperm.slane %v582, %v65
    %v650 = vadd.s32 %v65, 4294967288
    %v651 = vperm.slane %v585, %v650
    %vm652 = vcmask 130112
    %v653 = vsel %vm652, %v651, %v649
    %v654 = vperm.slane %v588, %v65
    %v655 = vperm.slane %v591, %v650
    %v656 = vsel %vm652, %v655, %v654
    %v657 = vperm.slane %v594, %v65
    %v658 = vperm.slane %v597, %v650
    %v659 = vsel %vm652, %v658, %v657
    %v660 = vperm.slane %v600, %v65
    %v661 = vperm.slane %v603, %v650
    %v662 = vsel %vm652, %v661, %v660
    %v663 = vperm.slane %v606, %v65
    %v664 = vperm.slane %v609, %v650
    %v665 = vsel %vm652, %v664, %v663
    %v666 = vperm.slane %v612, %v65
    %v667 = vperm.slane %v615, %v650
    %v668 = vsel %vm652, %v667, %v666
    %v669 = vperm.slane %v618, %v65
    %v670 = vperm.slane %v621, %v650
    %v671 = vsel %vm652, %v670, %v669
    %v672 = vperm.slane %v624, %v65
    %v673 = vperm.slane %v627, %v650
    %v674 = vsel %vm652, %v673, %v672
    %vm675 = vcmask 1041409
    %v676 = vsel %vm675, %v656, %v653
    %vm677 = vcmask 1042434
    %v678 = vsel %vm677, %v659, %v676
    %vm679 = vcmask 1043459
    %v680 = vsel %vm679, %v662, %v678
    %vm681 = vcmask 1044484
    %v682 = vsel %vm681, %v665, %v680
    %vm683 = vcmask 1045509
    %v684 = vsel %vm683, %v668, %v682
    %vm685 = vcmask 1046534
    %v686 = vsel %vm685, %v671, %v684
    %vm687 = vcmask 1047559
    %v688 = vsel %vm687, %v674, %v686
    %v690 = vadd.f32 %v631, %v688
    %v691 = vxor.u32 %v690, 2147483648
    %v692 = vmul.f32 %v691, 1.442695
    %v693 = vpow.pop %v692
    %v694 = vadd.f32 %v693, 1.0
    %v695 = vrcp.pop %v694
    %v696 = vmul.f32 %v694, %v695
    %v697 = vsub.f32 1.0, %v696
    %v698 = vmul.f32 %v695, %v697
    %v699 = vadd.f32 %v695, %v698
    %vm700 = vweird.f32 %v694
    %vm701 = vweird.f32 %v695
    %vm702 = vmor %vm700, %vm701
    %v703 = vsel %vm702, %v695, %v699
    %v704 = vand.u32 2147483647, %v694
    %vm705 = vcmp.eq.f32.partialorder %v704, 8.507059e+37
    %v706 = vand.u32 %v694, 2147483648
    %v707 = vor.u32 1.1754944e-38, %v706
    %v708 = vsel %vm705, %v707, %v703
    %v709 = vmul.f32 1.0, %v708
    %710 = vst.msk [vmem:[#allocation3] sm:$0xff] %vm133, %v709
    // Predicated region
    $region62: #{tpu_custom_call.1} parent=1 // pred_check
      _
    $region63: #{tpu_custom_call.1} parent=1 // pred_check_branch
      %712 = sbr.rel (0) target = $region65
    $region64: #{tpu_custom_call.1} parent=1 // pred_region
      %714 = vsyncadd [#allocation4], 0
      %s716 = sshll.u32 [#allocation3], 4
      %s717 = int_to_ptr.vmem [resolvable:$true] %s716
      %s718 = sshll.u32 %s15, 4
      %s719 = int_to_ptr.hbm [resolvable:$true] %s718
      %721 = dma.vmem_to_hbm [thread:$0]  %s717, 128, %s719, [#allocation4]
    $region65: #{tpu_custom_call.1} parent=1 // pred_fallthru
      _
    // Predicated region
    $region66: #{tpu_custom_call.1} parent=1 // pred_check
      _
    $region67: #{tpu_custom_call.1} parent=1 // pred_check_branch
      %723 = sbr.rel (0) target = $region69
    $region68: #{tpu_custom_call.1} parent=1 // pred_region
      %725 = dma.done [#allocation4], 128
    $region69: #{tpu_custom_call.1} parent=1 // pred_fallthru
      _
    %726 = vsyncpa [#allocation4], 1

</llo_original>
